<compile_context>
chip_gen: v7x
topology: tpu7x:2x2x1
jax: 0.10.0
libtpu: 0.0.40
codegen_flags: <defaults>
</compile_context>

<pallas_src>
import functools

import jax
import jax.numpy as jnp
from jax import lax
from jax.experimental import pallas as pl
from jax.experimental.pallas import tpu as pltpu


def _make_divisible(v, divisor, min_value=None):
    if min_value is None:
        min_value = divisor
    new_v = max(min_value, int(v + divisor / 2) // divisor * divisor)
    if new_v < 0.9 * v:
        new_v += divisor
    return new_v


# ----------------------------------------------------------------------------
# VMEM / tiling policy
# ----------------------------------------------------------------------------
_FALLBACK_VMEM_CAP = 64 * 1024 * 1024     # v7x per-TensorCore VMEM (smallest)


@functools.lru_cache(maxsize=1)
def _vmem_budget():
    """(scoped budget, physical capacity).  ~100 MiB on 128-MiB parts
    (v4/v5e/v6e), ~50 MiB on v7x's 64-MiB parts; conservative on failure."""
    cap = 0
    try:
        info = pltpu.get_tpu_info()
        cap = int(getattr(info, "vmem_capacity_bytes", 0) or 0)
    except Exception:
        cap = 0
    if cap < (16 << 20) or cap > (256 << 20):
        cap = _FALLBACK_VMEM_CAP
    return int(0.78 * cap), cap


def _pick_nb(n, per_sample_bytes, budget):
    """Samples per fused grid step: target ~2 MiB blocks, stay under the VMEM
    gate, keep >= min(N, 8) grid steps (pipelining / both TensorCores), and
    divide N so no partial batch blocks are needed."""
    target = 2 * 1024 * 1024
    nb_size = max(1, target // max(per_sample_bytes, 1))
    nb_vmem = max(1, int(0.85 * budget) // max(4 * per_sample_bytes, 1))
    min_steps = min(n, 8)
    nb_steps = max(1, n // max(min_steps, 1))
    nb = int(max(1, min(n, nb_size, nb_vmem, nb_steps)))
    while n % nb:
        nb -= 1
    return nb


def _pick_chunk(hw, nb, c, temp_budget=2 * 1024 * 1024):
    """Lane chunk for the in-kernel loops: the whole extent when the f32
    pooling temp fits the budget, else a multiple of 128 so every chunk start
    is 128-aligned (the last chunk may be ragged)."""
    if hw <= 128 or nb * c * hw * 4 <= temp_budget:
        return int(hw)
    chunk = (temp_budget // (nb * c * 4)) // 128 * 128
    return int(min(max(128, chunk), hw))


def _pick_hw_tile(c, hw, itemsize, budget, n_bufs):
    """Largest multiple-of-128 HW tile whose n_bufs buffered (C, tile) slabs
    fit the budget (ceil-div grid; a tile may run past HW and is masked)."""
    per_lane = max(1, n_bufs * c * itemsize)
    d = max(128, (budget // per_lane) // 128 * 128)
    d_max = pl.cdiv(hw, 128) * 128
    return int(min(d, d_max))


# ----------------------------------------------------------------------------
# Gate math (shared)
# ----------------------------------------------------------------------------
def _channel_mix(v, w_ref, b_ref, use_mxu):
    """1x1 conv as (M, Cin) @ (Cin, Cout) + b.  Small channel mixes stay on
    the VPU (MXU would pad to a full systolic tile and pay push/pop latency)."""
    b = b_ref[...].astype(jnp.float32)
    if use_mxu:
        return jnp.dot(v, w_ref[...], preferred_element_type=jnp.float32) + b
    w = w_ref[...].astype(jnp.float32)
    return jnp.sum(v[:, :, None] * w[None, :, :], axis=1) + b


def _gate_from_pooled(pooled, w1_ref, b1_ref, w2_ref, b2_ref, use_mxu):
    h = jnp.maximum(_channel_mix(pooled, w1_ref, b1_ref, use_mxu), 0.0)
    s = _channel_mix(h, w2_ref, b2_ref, use_mxu)
    return jnp.clip(s + 3.0, 0.0, 6.0) * (1.0 / 6.0)          # hard_sigmoid


# ----------------------------------------------------------------------------
# Path A: fused, Nb samples per grid step, block = (Nb, C, HW), chunked loops.
# ----------------------------------------------------------------------------
def _se_fused_kernel(x_ref, w1_ref, b1_ref, w2_ref, b2_ref, o_ref,
                     *, hw, chunk, use_mxu):
    nb, C, _ = x_ref.shape
    n_full = hw // chunk
    rem = hw - n_full * chunk

    def chunk_sum(start, size):
        xs = x_ref[:, :, pl.ds(start, size)]
        return jnp.sum(xs.astype(jnp.float32), axis=-1)

    # --- global average pool (f32 accumulation, chunked) ---
    if n_full <= 4:
        pooled = jnp.zeros((nb, C), jnp.float32)
        for i in range(n_full):                       # static unroll (<=4)
            pooled = pooled + chunk_sum(i * chunk, chunk)
    else:
        def pool_body(i, acc):
            start = pl.multiple_of(i * chunk, 128)
            return acc + chunk_sum(start, chunk)
        pooled = lax.fori_loop(0, n_full, pool_body,
                               jnp.zeros((nb, C), jnp.float32))
    if rem:                                           # 128-aligned ragged tail
        pooled = pooled + chunk_sum(n_full * chunk, rem)
    pooled = pooled * (1.0 / hw)

    gate = _gate_from_pooled(pooled, w1_ref, b1_ref, w2_ref, b2_ref, use_mxu)
    gate_b = gate.astype(o_ref.dtype)[:, :, None]     # (nb, C, 1), cast once

    # --- scale pass: native-dtype chunks straight into o_ref ---
    def scale_chunk(start, size):
        sl = pl.ds(start, size)
        o_ref[:, :, sl] = x_ref[:, :, sl] * gate_b

    if n_full <= 4:
        for i in range(n_full):
            scale_chunk(i * chunk, chunk)
    else:
        @pl.loop(0, n_full)
        def _(i):
            scale_chunk(pl.multiple_of(i * chunk, 128), chunk)
    if rem:
        scale_chunk(n_full * chunk, rem)


def _se_fused(x_flat, w1_t, b1_2d, w2_t, b2_2d, *, nb, chunk, use_mxu,
              vmem_limit):
    N, C, HW = x_flat.shape
    Cr = w1_t.shape[1]

    if chunk is None:
        chunk = _pick_chunk(HW, nb, C)
    else:
        chunk = int(min(chunk, HW))
        if chunk < HW and chunk % 128:
            chunk = max(128, chunk // 128 * 128)      # keep starts 128-aligned
    chunk = min(chunk, HW)

    kernel = functools.partial(_se_fused_kernel, hw=HW, chunk=chunk,
                               use_mxu=use_mxu)
    return pl.pallas_call(
        kernel,
        out_shape=jax.ShapeDtypeStruct((N, C, HW), x_flat.dtype),
        grid=(N // nb,),
        in_specs=[
            pl.BlockSpec((nb, C, HW), lambda n: (n, 0, 0)),
            pl.BlockSpec((C, Cr), lambda n: (0, 0)),
            pl.BlockSpec((1, Cr), lambda n: (0, 0)),
            pl.BlockSpec((Cr, C), lambda n: (0, 0)),
            pl.BlockSpec((1, C), lambda n: (0, 0)),
        ],
        out_specs=pl.BlockSpec((nb, C, HW), lambda n: (n, 0, 0)),
        compiler_params=pltpu.CompilerParams(
            dimension_semantics=("parallel",),
            vmem_limit_bytes=vmem_limit),
    )(x_flat, w1_t, b1_2d, w2_t, b2_2d)


# ----------------------------------------------------------------------------
# Path B (fallback for big slabs): two pipelined passes over HW tiles.
#   pass 1: grid (N, ceil(HW/t1)), HW "arbitrary" -> masked pooled sum + gate
#   pass 2: grid (N, ceil(HW/t2)), fully "parallel" -> out = x * gate
# ----------------------------------------------------------------------------
def _se_pool_gate_kernel(x_ref, w1_ref, b1_ref, w2_ref, b2_ref, gate_ref,
                         *, hw, hw_tile, use_mxu):
    k = pl.program_id(1)
    n_tiles = pl.num_programs(1)

    @pl.when(k == 0)
    def _init():
        gate_ref[...] = jnp.zeros_like(gate_ref)

    rem = hw % hw_tile            # static
    xs = x_ref[...].astype(jnp.float32)
    if rem:
        # ceil-div grid: the last tile runs past HW; mask out-of-range lanes.
        col = lax.broadcasted_iota(jnp.int32, x_ref.shape, 2)
        valid = (k * hw_tile + col) < hw
        xs = jnp.where(valid, xs, 0.0)
    gate_ref[...] += jnp.sum(xs, axis=-1)[:, None, :]

    @pl.when(k == n_tiles - 1)
    def _finalize():
        pooled = gate_ref[...][:, 0, :] * (1.0 / hw)               # (1, C)
        gate = _gate_from_pooled(pooled, w1_ref, b1_ref, w2_ref, b2_ref,
                                 use_mxu)
        gate_ref[...] = gate[:, None, :]


def _se_scale_kernel(x_ref, gate_ref, o_ref):
    gate = gate_ref[...][:, 0, :].astype(o_ref.dtype)              # (1, C)
    o_ref[...] = x_ref[...] * gate[:, :, None]


def _se_two_pass(x_flat, w1_t, b1_2d, w2_t, b2_2d, *, hw_tile, use_mxu,
                 vmem_limit):
    N, C, HW = x_flat.shape
    Cr = w1_t.shape[1]
    itemsize = x_flat.dtype.itemsize
    tile_budget = int(0.6 * vmem_limit)

    if hw_tile is not None:
        t1 = t2 = max(128, (int(hw_tile) // 128) * 128)
    else:
        t1 = _pick_hw_tile(C, HW, itemsize, tile_budget, n_bufs=2)  # in only
        t2 = _pick_hw_tile(C, HW, itemsize, tile_budget, n_bufs=4)  # in + out
    n1 = pl.cdiv(HW, t1)
    n2 = pl.cdiv(HW, t2)

    gate = pl.pallas_call(
        functools.partial(_se_pool_gate_kernel, hw=HW, hw_tile=t1,
                          use_mxu=use_mxu),
        out_shape=jax.ShapeDtypeStruct((N, 1, C), jnp.float32),
        grid=(N, n1),
        in_specs=[
            pl.BlockSpec((1, C, t1), lambda n, k: (n, 0, k)),
            pl.BlockSpec((C, Cr), lambda n, k: (0, 0)),
            pl.BlockSpec((1, Cr), lambda n, k: (0, 0)),
            pl.BlockSpec((Cr, C), lambda n, k: (0, 0)),
            pl.BlockSpec((1, C), lambda n, k: (0, 0)),
        ],
        out_specs=pl.BlockSpec((1, 1, C), lambda n, k: (n, 0, 0)),
        compiler_params=pltpu.CompilerParams(
            dimension_semantics=("parallel", "arbitrary"),
            vmem_limit_bytes=vmem_limit),
    )(x_flat, w1_t, b1_2d, w2_t, b2_2d)

    out_flat = pl.pallas_call(
        _se_scale_kernel,
        out_shape=jax.ShapeDtypeStruct((N, C, HW), x_flat.dtype),
        grid=(N, n2),
        in_specs=[
            pl.BlockSpec((1, C, t2), lambda n, k: (n, 0, k)),
            pl.BlockSpec((1, 1, C), lambda n, k: (n, 0, 0)),
        ],
        out_specs=pl.BlockSpec((1, C, t2), lambda n, k: (n, 0, k)),
        compiler_params=pltpu.CompilerParams(
            dimension_semantics=("parallel", "parallel"),
            vmem_limit_bytes=vmem_limit),
    )(x_flat, gate)
    return out_flat


# ----------------------------------------------------------------------------
# Public wrapper
# ----------------------------------------------------------------------------
def squeeze_excite(x, w1, b1, w2, b2, *, nb=None, chunk=None, hw_tile=None,
                   force_two_pass=False):
    """x: (N, C, H, W) NCHW.  w1: (Cr, C) torch-style, w2: (C, Cr)."""
    N, C, H, W = x.shape
    Cr = w1.shape[0]
    HW = H * W
    itemsize = x.dtype.itemsize

    x_flat = x.reshape(N, C, HW)
    w1_t = jnp.transpose(w1)            # (C, Cr)
    w2_t = jnp.transpose(w2)            # (Cr, C)
    b1_2d = b1.reshape(1, Cr)
    b2_2d = b2.reshape(1, C)

    budget, vmem_cap = _vmem_budget()

    # MXU only when both channel dims actually fill systolic rows/cols.
    use_mxu = (C >= 128) and (Cr >= 128)

    per_sample_bytes = C * HW * itemsize
    w_bytes = 2 * int(w1_t.size + w2_t.size + b1_2d.size + b2_2d.size) \
        * w1_t.dtype.itemsize
    fits_fused = (4 * per_sample_bytes + w_bytes) <= int(0.85 * budget)

    if nb is None:
        nb_eff = _pick_nb(N, per_sample_bytes, budget)
    else:
        nb_eff = int(max(1, min(nb, N)))
        while N % nb_eff:
            nb_eff -= 1

    # v7x-like (64 MiB VMEM, 2 TCs): a single fused grid step would idle one
    # TensorCore; the two-pass grid is parallel on both axes.
    two_tc_likely = vmem_cap <= (96 << 20)
    single_step_mc = two_tc_likely and (N // nb_eff) < 2 and HW > 256

    if force_two_pass or (not fits_fused) or single_step_mc:
        out_flat = _se_two_pass(x_flat, w1_t, b1_2d, w2_t, b2_2d,
                                hw_tile=hw_tile, use_mxu=use_mxu,
                                vmem_limit=budget)
    else:
        out_flat = _se_fused(x_flat, w1_t, b1_2d, w2_t, b2_2d,
                             nb=nb_eff, chunk=chunk, use_mxu=use_mxu,
                             vmem_limit=budget)
    return out_flat.reshape(N, C, H, W)


def reference_se(x, w1, b1, w2, b2):
    """Pure-JAX reference of the PyTorch forward for verification."""
    pooled = jnp.mean(x, axis=(2, 3))                       # (N, C)
    h = jnp.maximum(pooled @ w1.T + b1, 0.0)                # (N, Cr)
    s = h @ w2.T + b2                                       # (N, C)
    gate = jnp.clip(s + 3.0, 0.0, 6.0) / 6.0
    return x * gate[:, :, None, None]


if __name__ == "__main__":
    def make_inputs(key, n, in_chs, h, w, se_ratio=0.25, divisor=4):
        reduced = _make_divisible(in_chs * se_ratio, divisor)
        kx, k1, kb1, k2, kb2 = jax.random.split(key, 5)
        x = jax.random.normal(kx, (n, in_chs, h, w), dtype=jnp.float32)
        w1 = jax.random.normal(k1, (reduced, in_chs), dtype=jnp.float32) * 0.1
        b1 = jax.random.normal(kb1, (reduced,), dtype=jnp.float32) * 0.1
        w2 = jax.random.normal(k2, (in_chs, reduced), dtype=jnp.float32) * 0.1
        b2 = jax.random.normal(kb2, (in_chs,), dtype=jnp.float32) * 0.1
        return x, w1, b1, w2, b2

    key = jax.random.PRNGKey(0)
    k0, k1, k2, k3 = jax.random.split(key, 4)

    # 1) Module config (in_chs=4, se_ratio=0.25, divisor=4): fused path.
    x, w1, b1, w2, b2 = make_inputs(k0, 2, 4, 16, 16)
    out = jax.block_until_ready(squeeze_excite(x, w1, b1, w2, b2))
    assert out.shape == x.shape
    assert jnp.allclose(out, reference_se(x, w1, b1, w2, b2),
                        atol=1e-5, rtol=1e-5), "fused path mismatch"

    # 2) Fused path, Nb>1 samples/block and >4 chunks (fori_loop / pl.loop).
    x, w1, b1, w2, b2 = make_inputs(k1, 4, 8, 24, 32)
    out = jax.block_until_ready(
        squeeze_excite(x, w1, b1, w2, b2, nb=2, chunk=128))
    assert jnp.allclose(out, reference_se(x, w1, b1, w2, b2),
                        atol=1e-5, rtol=1e-5), "fused nb/fori mismatch"

    # 3) Fused path, HW not a multiple of 128 -> ragged 128-aligned tail chunk.
    x, w1, b1, w2, b2 = make_inputs(k2, 2, 8, 16, 41)
    out = jax.block_until_ready(squeeze_excite(x, w1, b1, w2, b2, chunk=128))
    assert jnp.allclose(out, reference_se(x, w1, b1, w2, b2),
                        atol=1e-5, rtol=1e-5), "fused ragged-chunk mismatch"

    # 4) Two-pass fallback, full 128-wide HW tiles (accumulator path).
    x, w1, b1, w2, b2 = make_inputs(k3, 2, 4, 16, 16)
    out = jax.block_until_ready(
        squeeze_excite(x, w1, b1, w2, b2, force_two_pass=True, hw_tile=128))
    assert jnp.allclose(out, reference_se(x, w1, b1, w2, b2),
                        atol=1e-5, rtol=1e-5), "two-pass mismatch"

    # 5) Two-pass fallback, HW=49 (<128) -> iota-masked partial-tile sum.
    x, w1, b1, w2, b2 = make_inputs(k0, 2, 8, 7, 7)
    out = jax.block_until_ready(
        squeeze_excite(x, w1, b1, w2, b2, force_two_pass=True))
    assert jnp.allclose(out, reference_se(x, w1, b1, w2, b2),
                        atol=1e-5, rtol=1e-5), "two-pass masked-tail mismatch"

    print("KERNEL_OK")
</pallas_src>

<mosaic_0001>
module attributes {stable_mosaic.version = 11 : i64} {
  func.func @_se_fused_kernel(%arg0: i32, %arg1: memref<1x4x256xf32, #tpu.memory_space<vmem>>, %arg2: memref<4x4xf32, #tpu.memory_space<vmem>>, %arg3: memref<1x4xf32, #tpu.memory_space<vmem>>, %arg4: memref<4x4xf32, #tpu.memory_space<vmem>>, %arg5: memref<1x4xf32, #tpu.memory_space<vmem>>, %arg6: memref<1x4x256xf32, #tpu.memory_space<vmem>>) attributes {dimension_semantics = [#tpu.dimension_semantics<parallel>], iteration_bounds = array<i64: 2>, scalar_prefetch = 0 : i64, scratch_operands = 0 : i64, tpu.core_type = #tpu.core_type<tc>, window_params = [{transform_indices = @transform_0, window_bounds = array<i64: 1, 4, 256>}, {pipeline_mode = #tpu.pipeline_mode<synchronous>, transform_indices = @transform_1, window_bounds = array<i64: 4, 4>}, {pipeline_mode = #tpu.pipeline_mode<synchronous>, transform_indices = @transform_2, window_bounds = array<i64: 1, 4>}, {pipeline_mode = #tpu.pipeline_mode<synchronous>, transform_indices = @transform_3, window_bounds = array<i64: 4, 4>}, {pipeline_mode = #tpu.pipeline_mode<synchronous>, transform_indices = @transform_4, window_bounds = array<i64: 1, 4>}, {transform_indices = @transform_5, window_bounds = array<i64: 1, 4, 256>}]} {
    %cst = arith.constant 0.000000e+00 : f32
    %0 = vector.broadcast %cst : f32 to vector<1x4xf32>
    %c0 = arith.constant 0 : index
    %c0_0 = arith.constant 0 : index
    %c0_1 = arith.constant 0 : index
    %1 = vector.load %arg1[%c0, %c0_0, %c0_1] : memref<1x4x256xf32, #tpu.memory_space<vmem>>, vector<1x4x256xf32>
    %cst_2 = arith.constant dense<0.000000e+00> : vector<1x4xf32>
    %2 = vector.multi_reduction <add>, %1, %cst_2 [2] : vector<1x4x256xf32> to vector<1x4xf32>
    %3 = arith.addf %0, %2 : vector<1x4xf32>
    %cst_3 = arith.constant 3.906250e-03 : f32
    %4 = vector.broadcast %cst_3 : f32 to vector<1x4xf32>
    %5 = arith.mulf %3, %4 : vector<1x4xf32>
    %c0_4 = arith.constant 0 : index
    %c0_5 = arith.constant 0 : index
    %6 = vector.load %arg3[%c0_4, %c0_5] : memref<1x4xf32, #tpu.memory_space<vmem>>, vector<1x4xf32>
    %c0_6 = arith.constant 0 : index
    %c0_7 = arith.constant 0 : index
    %7 = vector.load %arg2[%c0_6, %c0_7] : memref<4x4xf32, #tpu.memory_space<vmem>>, vector<4x4xf32>
    %8 = vector.shape_cast %5 : vector<1x4xf32> to vector<1x4x1xf32>
    %9 = vector.shape_cast %7 : vector<4x4xf32> to vector<1x4x4xf32>
    %10 = vector.broadcast %8 : vector<1x4x1xf32> to vector<1x4x4xf32>
    %11 = arith.mulf %10, %9 : vector<1x4x4xf32>
    %cst_8 = arith.constant dense<0.000000e+00> : vector<1x4xf32>
    %12 = vector.multi_reduction <add>, %11, %cst_8 [1] : vector<1x4x4xf32> to vector<1x4xf32>
    %13 = arith.addf %12, %6 : vector<1x4xf32>
    %cst_9 = arith.constant 0.000000e+00 : f32
    %14 = vector.broadcast %cst_9 : f32 to vector<1x4xf32>
    %15 = arith.maximumf %13, %14 : vector<1x4xf32>
    %c0_10 = arith.constant 0 : index
    %c0_11 = arith.constant 0 : index
    %16 = vector.load %arg5[%c0_10, %c0_11] : memref<1x4xf32, #tpu.memory_space<vmem>>, vector<1x4xf32>
    %c0_12 = arith.constant 0 : index
    %c0_13 = arith.constant 0 : index
    %17 = vector.load %arg4[%c0_12, %c0_13] : memref<4x4xf32, #tpu.memory_space<vmem>>, vector<4x4xf32>
    %18 = vector.shape_cast %15 : vector<1x4xf32> to vector<1x4x1xf32>
    %19 = vector.shape_cast %17 : vector<4x4xf32> to vector<1x4x4xf32>
    %20 = vector.broadcast %18 : vector<1x4x1xf32> to vector<1x4x4xf32>
    %21 = arith.mulf %20, %19 : vector<1x4x4xf32>
    %cst_14 = arith.constant dense<0.000000e+00> : vector<1x4xf32>
    %22 = vector.multi_reduction <add>, %21, %cst_14 [1] : vector<1x4x4xf32> to vector<1x4xf32>
    %23 = arith.addf %22, %16 : vector<1x4xf32>
    %cst_15 = arith.constant 3.000000e+00 : f32
    %24 = vector.broadcast %cst_15 : f32 to vector<1x4xf32>
    %25 = arith.addf %23, %24 : vector<1x4xf32>
    %cst_16 = arith.constant 0.000000e+00 : f32
    %cst_17 = arith.constant 6.000000e+00 : f32
    %26 = vector.broadcast %cst_16 : f32 to vector<1x4xf32>
    %27 = arith.maximumf %26, %25 : vector<1x4xf32>
    %28 = vector.broadcast %cst_17 : f32 to vector<1x4xf32>
    %29 = arith.minimumf %28, %27 : vector<1x4xf32>
    %cst_18 = arith.constant 0.166666672 : f32
    %30 = vector.broadcast %cst_18 : f32 to vector<1x4xf32>
    %31 = arith.mulf %29, %30 : vector<1x4xf32>
    %32 = vector.shape_cast %31 : vector<1x4xf32> to vector<1x4x1xf32>
    %c0_19 = arith.constant 0 : index
    %c0_20 = arith.constant 0 : index
    %c0_21 = arith.constant 0 : index
    %33 = vector.load %arg1[%c0_19, %c0_20, %c0_21] : memref<1x4x256xf32, #tpu.memory_space<vmem>>, vector<1x4x256xf32>
    %34 = vector.broadcast %32 : vector<1x4x1xf32> to vector<1x4x256xf32>
    %35 = arith.mulf %33, %34 : vector<1x4x256xf32>
    %c0_22 = arith.constant 0 : index
    %c0_23 = arith.constant 0 : index
    %c0_24 = arith.constant 0 : index
    %36 = vector.load %arg6[%c0_22, %c0_23, %c0_24] : memref<1x4x256xf32, #tpu.memory_space<vmem>>, vector<1x4x256xf32>
    tpu.vector_store %arg6[%c0_22, %c0_23, %c0_24], %35 {strides = array<i32>} : memref<1x4x256xf32, #tpu.memory_space<vmem>>, vector<1x4x256xf32>,
    return
  }
  func.func @transform_0(%arg0: i32) -> (i32, i32, i32) {
    %c0_i32 = arith.constant 0 : i32
    %c0_i32_0 = arith.constant 0 : i32
    %c0_i32_1 = arith.constant 0 : i32
    return %arg0, %c0_i32, %c0_i32_0 : i32, i32, i32
  }
  func.func @transform_1(%arg0: i32) -> (i32, i32) {
    %c0_i32 = arith.constant 0 : i32
    %c0_i32_0 = arith.constant 0 : i32
    %c0_i32_1 = arith.constant 0 : i32
    return %c0_i32, %c0_i32_0 : i32, i32
  }
  func.func @transform_2(%arg0: i32) -> (i32, i32) {
    %c0_i32 = arith.constant 0 : i32
    %c0_i32_0 = arith.constant 0 : i32
    %c0_i32_1 = arith.constant 0 : i32
    return %c0_i32, %c0_i32_0 : i32, i32
  }
  func.func @transform_3(%arg0: i32) -> (i32, i32) {
    %c0_i32 = arith.constant 0 : i32
    %c0_i32_0 = arith.constant 0 : i32
    %c0_i32_1 = arith.constant 0 : i32
    return %c0_i32, %c0_i32_0 : i32, i32
  }
  func.func @transform_4(%arg0: i32) -> (i32, i32) {
    %c0_i32 = arith.constant 0 : i32
    %c0_i32_0 = arith.constant 0 : i32
    %c0_i32_1 = arith.constant 0 : i32
    return %c0_i32, %c0_i32_0 : i32, i32
  }
  func.func @transform_5(%arg0: i32) -> (i32, i32, i32) {
    %c0_i32 = arith.constant 0 : i32
    %c0_i32_0 = arith.constant 0 : i32
    %c0_i32_1 = arith.constant 0 : i32
    return %arg0, %c0_i32, %c0_i32_0 : i32, i32, i32
  }
}

</mosaic_0001>

<llo_original>
// kernel: tpu_custom_call.1
$region0: #{tpu_custom_call.1}
  #allocation0 [shape = 'u32[]', space=smem, size = 0x4, offset = 0x4, fixed_abs, tag = 'smem constant byte address 0x4 - core index']
  #allocation1 [shape = 'u32[144,128]{1,0:T(1,128)}', space=vmem, size = 0x12000, scoped, tag = 'internal scratch']
  %s0 = inlined_call_operand.hbm [shape: f32[2,4,256], index: 0, kind: input, shape index: {}]
  %s1 = inlined_call_operand.hbm [shape: f32[4,4], index: 1, kind: input, shape index: {}]
  %s2 = inlined_call_operand.vmem [shape: f32[1,4], index: 2, kind: input, shape index: {}]
  %s3 = inlined_call_operand.vmem [shape: f32[4,4], index: 3, kind: input, shape index: {}]
  %s4 = inlined_call_operand.vmem [shape: f32[1,4], index: 4, kind: input, shape index: {}]
  %s5 = inlined_call_operand.hbm [shape: f32[2,4,256], index: 5, kind: output, shape index: {}]
  %s6 = sld [smem:[#allocation0]]
  $region61: #{tpu_custom_call.1} parent=0
    _
  %s8 = ssub.s32 1, %s6
  %s9 = scalar_select 0, %s8, %s6
  $region1: #{tpu_custom_call.1} parent=0
    #allocation2 [shape = 'u8[8192]{0}', space=vmem, size = 0x2000, scoped, tag = 'input window, operand 0']
    #allocation3 [shape = 's32[2]{0}', space=sflag, size = 0x8, scoped, tag = 'scoped memory for tpu_custom_call.1']
    #allocation4 [shape = 's32[2]{0}', space=sflag, size = 0x8, scoped, tag = 'scoped memory for tpu_custom_call.1']
    #allocation5 [shape = 'u8[2048]{0}', space=vmem, size = 0x800, scoped, tag = 'input window, operand 1, single buffered']
    #allocation6 [shape = 's32[1]{0}', space=sflag, size = 0x4, scoped, tag = 'scoped memory for tpu_custom_call.1']
    #allocation7 [shape = 'u8[8192]{0}', space=vmem, size = 0x2000, scoped, tag = 'output window, operand 0']
    %10 = vsyncpa [#allocation3], 0
    %s11 = scalar_lea.sflag [#allocation3], 1
    %12 = vsyncpa %s11, 0
    %13 = vsyncpa [#allocation6], 0
    %14 = vsyncpa [#allocation4], 0
    %s15 = scalar_lea.sflag [#allocation4], 1
    %16 = vsyncpa %s15, 0
    loop: start=0, step=1, limit=4
    $region2: #{tpu_custom_call.1} parent=1 // loop_pre_header
      _
    $region3: #{tpu_custom_call.1} parent=1 // loop_header
      %s18 = sphi 0, %s22
      %p19 = scmp.ge.s32.totalorder %s18, 4
      %s28 = sphi 0, %s30
      %s31 = sphi 0, %s28
      %s32 = sphi 0, %s31
      %s48 = sphi 0, %s32
      %s52 = sphi 0, %s52
      %s54 = sphi 0, %s52
      %s55 = sphi 0, %s54
      %s69 = sphi 0, %s55
      %s73 = sphi 0, %s73
      %s75 = sphi 0, %s73
      %s76 = sphi 0, %s75
      %s90 = sphi 0, %s76
      %s94 = sphi 0, %s94
      %s96 = sphi 0, %s94
      %s97 = sphi 0, %s96
      %s111 = sphi 0, %s97
      %s115 = sphi 0, %s115
      %s117 = sphi 0, %s115
      %s118 = sphi 0, %s117
      %s132 = sphi 0, %s118
      %s138 = sphi 0, %s140
      %s141 = sphi 0, %s138
      %s142 = sphi 0, %s141
      %s158 = sphi 0, %s142
    $region4: #{tpu_custom_call.1} parent=1 // loop_header_branch
      %21 = sbr.rel (%p19) target = $region8
    $region5: #{tpu_custom_call.1} parent=1 // loop_body
      %s23 = ssub.s32 %s18, 1
      %s24 = ssub.s32 %s18, 2
      %s25 = sadd.s32 %s18, 1
      %s26 = ssub.s32 %s18, %s25
      %p27 = scmp.eq.s32.totalorder %s26, 0
      %s29 = sadd.s32 %s28, 1
      %s30 = scalar_select %p27, %s28, %s29
      %p33 = pneg %p27
      %p34 = scmp.eq.s32.totalorder %s18, 1
      %p35 = por %p33, %p34
      %p36 = scmp.ne.s32.totalorder %s28, %s31
      %p37 = scmp.eq.s32.totalorder %s18, 0
      %p38 = por %p36, %p37
      %p39 = scmp.ne.s32.totalorder %s28, %s31
      %p40 = scmp.eq.s32.totalorder %s23, 1
      %p41 = por %p39, %p40
      %p42 = scmp.ne.s32.totalorder %s31, %s32
      %p43 = scmp.eq.s32.totalorder %s23, 0
      %p44 = por %p42, %p43
      %p45 = scmp.ne.s32.totalorder %s31, %s32
      %p46 = scmp.eq.s32.totalorder %s24, 1
      %p47 = por %p45, %p46
      %p49 = scmp.ne.s32.totalorder %s32, %s48
      %p50 = scmp.eq.s32.totalorder %s24, 0
      %p51 = por %p49, %p50
      %s53 = sadd.s32 %s52, 1
      %p56 = scmp.eq.s32.totalorder %s18, 1
      %p57 = scmp.ne.s32.totalorder %s52, %s54
      %p58 = scmp.eq.s32.totalorder %s18, 0
      %p59 = por %p57, %p58
      %p60 = scmp.ne.s32.totalorder %s52, %s54
      %p61 = scmp.eq.s32.totalorder %s23, 1
      %p62 = por %p60, %p61
      %p63 = scmp.ne.s32.totalorder %s54, %s55
      %p64 = scmp.eq.s32.totalorder %s23, 0
      %p65 = por %p63, %p64
      %p66 = scmp.ne.s32.totalorder %s54, %s55
      %p67 = scmp.eq.s32.totalorder %s24, 1
      %p68 = por %p66, %p67
      %p70 = scmp.ne.s32.totalorder %s55, %s69
      %p71 = scmp.eq.s32.totalorder %s24, 0
      %p72 = por %p70, %p71
      %s74 = sadd.s32 %s73, 1
      %p77 = scmp.eq.s32.totalorder %s18, 1
      %p78 = scmp.ne.s32.totalorder %s73, %s75
      %p79 = scmp.eq.s32.totalorder %s18, 0
      %p80 = por %p78, %p79
      %p81 = scmp.ne.s32.totalorder %s73, %s75
      %p82 = scmp.eq.s32.totalorder %s23, 1
      %p83 = por %p81, %p82
      %p84 = scmp.ne.s32.totalorder %s75, %s76
      %p85 = scmp.eq.s32.totalorder %s23, 0
      %p86 = por %p84, %p85
      %p87 = scmp.ne.s32.totalorder %s75, %s76
      %p88 = scmp.eq.s32.totalorder %s24, 1
      %p89 = por %p87, %p88
      %p91 = scmp.ne.s32.totalorder %s76, %s90
      %p92 = scmp.eq.s32.totalorder %s24, 0
      %p93 = por %p91, %p92
      %s95 = sadd.s32 %s94, 1
      %p98 = scmp.eq.s32.totalorder %s18, 1
      %p99 = scmp.ne.s32.totalorder %s94, %s96
      %p100 = scmp.eq.s32.totalorder %s18, 0
      %p101 = por %p99, %p100
      %p102 = scmp.ne.s32.totalorder %s94, %s96
      %p103 = scmp.eq.s32.totalorder %s23, 1
      %p104 = por %p102, %p103
      %p105 = scmp.ne.s32.totalorder %s96, %s97
      %p106 = scmp.eq.s32.totalorder %s23, 0
      %p107 = por %p105, %p106
      %p108 = scmp.ne.s32.totalorder %s96, %s97
      %p109 = scmp.eq.s32.totalorder %s24, 1
      %p110 = por %p108, %p109
      %p112 = scmp.ne.s32.totalorder %s97, %s111
      %p113 = scmp.eq.s32.totalorder %s24, 0
      %p114 = por %p112, %p113
      %s116 = sadd.s32 %s115, 1
      %p119 = scmp.eq.s32.totalorder %s18, 1
      %p120 = scmp.ne.s32.totalorder %s115, %s117
      %p121 = scmp.eq.s32.totalorder %s18, 0
      %p122 = por %p120, %p121
      %p123 = scmp.ne.s32.totalorder %s115, %s117
      %p124 = scmp.eq.s32.totalorder %s23, 1
      %p125 = por %p123, %p124
      %p126 = scmp.ne.s32.totalorder %s117, %s118
      %p127 = scmp.eq.s32.totalorder %s23, 0
      %p128 = por %p126, %p127
      %p129 = scmp.ne.s32.totalorder %s117, %s118
      %p130 = scmp.eq.s32.totalorder %s24, 1
      %p131 = por %p129, %p130
      %p133 = scmp.ne.s32.totalorder %s118, %s132
      %p134 = scmp.eq.s32.totalorder %s24, 0
      %p135 = por %p133, %p134
      %s136 = ssub.s32 %s18, %s25
      %p137 = scmp.eq.s32.totalorder %s136, 0
      %s139 = sadd.s32 %s138, 1
      %s140 = scalar_select %p137, %s138, %s139
      %p143 = pneg %p137
      %p144 = scmp.eq.s32.totalorder %s18, 1
      %p145 = por %p143, %p144
      %p146 = scmp.ne.s32.totalorder %s138, %s141
      %p147 = scmp.eq.s32.totalorder %s18, 0
      %p148 = por %p146, %p147
      %p149 = scmp.ne.s32.totalorder %s138, %s141
      %p150 = scmp.eq.s32.totalorder %s23, 1
      %p151 = por %p149, %p150
      %p152 = scmp.ne.s32.totalorder %s141, %s142
      %p153 = scmp.eq.s32.totalorder %s23, 0
      %p154 = por %p152, %p153
      %p155 = scmp.ne.s32.totalorder %s141, %s142
      %p156 = scmp.eq.s32.totalorder %s24, 1
      %p157 = por %p155, %p156
      %p159 = scmp.ne.s32.totalorder %s142, %s158
      %p160 = scmp.eq.s32.totalorder %s24, 0
      %p161 = por %p159, %p160
      %p162 = scmp.le.s32.totalorder 1, %s18
      %p163 = scmp.lt.s32.totalorder %s18, 3
      %p164 = pnand %p162, %p163
      %p165 = pneg %p164
      // Predicated region
      $region9: #{tpu_custom_call.1} parent=5 // pred_check
        _
      $region10: #{tpu_custom_call.1} parent=5 // pred_check_branch
        %167 = sbr.rel (%p164) target = $region12
      $region11: #{tpu_custom_call.1} parent=5 // pred_region
        %s168 = ssub.s32 %s18, 1
        // Predicated region
        $region13: #{tpu_custom_call.1} parent=11 // pred_check
          %p169 = pneg %p65
        $region14: #{tpu_custom_call.1} parent=11 // pred_check_branch
          %171 = sbr.rel (%p169) target = $region16
        $region15: #{tpu_custom_call.1} parent=11 // pred_region
          %s173 = ssub.s32 64, 64
          %174 = vsyncadd [#allocation6], %s173
          %s176 = sshll.u32 [#allocation5], 4
          %s177 = int_to_ptr.vmem [resolvable:$true] %s176
          %179 = dma.hbm_to_vmem [thread:$0]  %s1, 64, %s177, [#allocation6]
        $region16: #{tpu_custom_call.1} parent=11 // pred_fallthru
          _
        // Predicated region
        $region17: #{tpu_custom_call.1} parent=11 // pred_check
          %p180 = pneg %p86
        $region18: #{tpu_custom_call.1} parent=11 // pred_check_branch
          %182 = sbr.rel (%p180) target = $region20
        $region19: #{tpu_custom_call.1} parent=11 // pred_region
          _
        $region20: #{tpu_custom_call.1} parent=11 // pred_fallthru
          _
        // Predicated region
        $region21: #{tpu_custom_call.1} parent=11 // pred_check
          %p183 = pneg %p107
        $region22: #{tpu_custom_call.1} parent=11 // pred_check_branch
          %185 = sbr.rel (%p183) target = $region24
        $region23: #{tpu_custom_call.1} parent=11 // pred_region
          _
        $region24: #{tpu_custom_call.1} parent=11 // pred_fallthru
          _
        // Predicated region
        $region25: #{tpu_custom_call.1} parent=11 // pred_check
          %p186 = pneg %p128
        $region26: #{tpu_custom_call.1} parent=11 // pred_check_branch
          %188 = sbr.rel (%p186) target = $region28
        $region27: #{tpu_custom_call.1} parent=11 // pred_region
          _
        $region28: #{tpu_custom_call.1} parent=11 // pred_fallthru
          _
      $region12: #{tpu_custom_call.1} parent=5 // pred_fallthru
        _
      %p189 = scmp.lt.s32.totalorder %s18, 2
      // Predicated region
      $region29: #{tpu_custom_call.1} parent=5 // pred_check
        %p190 = pneg %p189
      $region30: #{tpu_custom_call.1} parent=5 // pred_check_branch
        %192 = sbr.rel (%p190) target = $region32
      $region31: #{tpu_custom_call.1} parent=5 // pred_region
        // Predicated region
        $region33: #{tpu_custom_call.1} parent=31 // pred_check
          %p193 = pneg %p38
        $region34: #{tpu_custom_call.1} parent=31 // pred_check_branch
          %195 = sbr.rel (%p193) target = $region36
        $region35: #{tpu_custom_call.1} parent=31 // pred_region
          %s196 = sand.u32 %s28, 1
          %s197 = scalar_lea.sflag [#allocation3], %s196
          %s198 = sand.u32 %s28, 1
          %s199 = smul.addr %s198, 8
          %s200 = scalar_lea.vmem [#allocation2], %s199
          %s202 = ssub.s32 128, 128
          %203 = vsyncadd %s197, %s202
          %s204 = smul.addr %s18, 2
          %s205 = smul.addr %s204, 64
          %s206 = scalar_lea.hbm %s0, %s205
          %s208 = sshll.u32 %s200, 4
          %s209 = int_to_ptr.vmem [resolvable:$true] %s208
          %211 = dma.hbm_to_vmem [thread:$0]  %s206, 128, %s209, %s197
        $region36: #{tpu_custom_call.1} parent=31 // pred_fallthru
          _
      $region32: #{tpu_custom_call.1} parent=5 // pred_fallthru
        _
      %p212 = scmp.le.s32.totalorder 1, %s18
      %p213 = scmp.lt.s32.totalorder %s18, 3
      %p214 = pnand %p212, %p213
      %p215 = pneg %p214
      // Predicated region
      $region37: #{tpu_custom_call.1} parent=5 // pred_check
        _
      $region38: #{tpu_custom_call.1} parent=5 // pred_check_branch
        %217 = sbr.rel (%p214) target = $region40
      $region39: #{tpu_custom_call.1} parent=5 // pred_region
        %s218 = ssub.s32 %s18, 1
        %s219 = sand.u32 %s31, 1
        %s220 = scalar_lea.sflag [#allocation3], %s219
        %s221 = sand.u32 %s31, 1
        %s222 = smul.addr %s221, 8
        %s223 = scalar_lea.vmem [#allocation2], %s222
        // Predicated region
        $region41: #{tpu_custom_call.1} parent=39 // pred_check
          %p224 = pneg %p44
        $region42: #{tpu_custom_call.1} parent=39 // pred_check_branch
          %226 = sbr.rel (%p224) target = $region44
        $region43: #{tpu_custom_call.1} parent=39 // pred_region
          %227 = dma.done %s220, 128
        $region44: #{tpu_custom_call.1} parent=39 // pred_fallthru
          _
        // Predicated region
        $region45: #{tpu_custom_call.1} parent=39 // pred_check
          %p228 = pneg %p65
        $region46: #{tpu_custom_call.1} parent=39 // pred_check_branch
          %230 = sbr.rel (%p228) target = $region48
        $region47: #{tpu_custom_call.1} parent=39 // pred_region
          %231 = dma.done [#allocation6], 64
        $region48: #{tpu_custom_call.1} parent=39 // pred_fallthru
          _
        %s232 = sand.u32 %s31, 1
        %s233 = scalar_lea.sflag [#allocation3], %s232
        %s234 = sand.u32 %s31, 1
        %s235 = smul.addr %s234, 8
        %s236 = scalar_lea.vmem [#allocation2], %s235
        %p237 = pneg %p44
        %p238 = pneg %p41
        %p239 = pneg %p65
        %p240 = pneg %p62
        %p241 = pneg %p86
        %p242 = pneg %p83
        %p243 = pneg %p107
        %p244 = pneg %p104
        %p245 = pneg %p128
        %p246 = pneg %p125
        %p247 = pneg %p154
        %p248 = pneg %p151
        %s249 = sand.u32 %s141, 1
        %s250 = scalar_lea.sflag [#allocation4], %s249
        %s251 = sand.u32 %s141, 1
        %s252 = smul.addr %s251, 8
        %s253 = scalar_lea.vmem [#allocation7], %s252
        %v254 = vld [vmem:[%s223] sm:$0xff]
        %v256 = vcombine.high %v254, %v254
        %vm258 = vcmask 1043456
        %v259 = vsel %vm258, %v254, 0.0
        %v260 = vsel %vm258, %v256, 0.0
        %v261 = vadd.f32 %v259, %v260
        %262 = vadd.xlane.f32.xlu0 %v261
        %v263 = vpop.xlane.xlu0 %262
        %v264 = vadd.f32 %v263, 0.0
        %v265 = vmul.f32 %v264, 0.00390625
        %v266 = vld [vmem:[%s2] sm:$0x1]
        %v267 = vld [vmem:[#allocation5] sm:$0xf]
        %v268 = vmul.f32 %v265, %v267
        %vm269 = vcmask 27648
        %v270 = vsel %vm269, %v268, 0.0
        %v271 = vrot.slane %v270, 4
        %v272 = vadd.f32 %v270, %v271
        %v273 = vrot.slane %v272, 2
        %v274 = vadd.f32 %v272, %v273
        %v275 = vrot.slane %v274, 1
        %v276 = vadd.f32 %v274, %v275
        %v277 = vadd.f32 %v276, %v266
        %v278 = vmax.f32 %v277, 0.0
        %v279 = vld [vmem:[%s4] sm:$0x1]
        %v280 = vld [vmem:[%s3] sm:$0xf]
        %v281 = vlaneseq
        %v282 = vshrl.u32 %v281, 7
        %v283 = vsub.s32 0, %v282
        %v284 = vrot.slane %v278, %v283
        %286 = vbcast.lane.b32.xlu0 %v284, 256
        %v287 = vpop.permute.xlu0 %286
        %v288 = vmul.f32 %v287, %v280
        %v289 = vsel %vm269, %v288, 0.0
        %v290 = vrot.slane %v289, 4
        %v291 = vadd.f32 %v289, %v290
        %v292 = vrot.slane %v291, 2
        %v293 = vadd.f32 %v291, %v292
        %v294 = vrot.slane %v293, 1
        %v295 = vadd.f32 %v293, %v294
        %v296 = vadd.f32 %v295, %v279
        %v297 = vadd.f32 %v296, 3.0
        %v298 = vmax.f32 %v297, 0.0
        %v299 = vmin.f32 %v298, 6.0
        %v300 = vmul.f32 %v299, 0.16666667
        %v301 = vlaneseq
        %v302 = vshrl.u32 %v301, 7
        %v303 = vsub.s32 0, %v302
        %v304 = vrot.slane %v300, %v303
        %306 = vbcast.lane.b32.xlu0 %v304, 256
        %v307 = vpop.permute.xlu0 %306
        %v310 = vunpack.c.l.s4 839922192
        %v311 = vunpack.c.0.s8 %v310
        %v312 = vlaneseq
        %v313 = vshrl.u32 %v312, 7
        %v314 = vsub.s32 %v311, %v313
        %v315 = vrot.slane %v307, %v314
        %v317 = vmul.f32 %v254, %v315
        %318 = vst [vmem:[%s253] sm:$0xff] %v317
        %s319 = sand.u32 %s141, 1
        %s320 = scalar_lea.sflag [#allocation4], %s319
        %s321 = sand.u32 %s141, 1
        %s322 = smul.addr %s321, 8
        %s323 = scalar_lea.vmem [#allocation7], %s322
        // Predicated region
        $region49: #{tpu_custom_call.1} parent=39 // pred_check
          %p324 = pneg %p151
        $region50: #{tpu_custom_call.1} parent=39 // pred_check_branch
          %326 = sbr.rel (%p324) target = $region52
        $region51: #{tpu_custom_call.1} parent=39 // pred_region
          %s328 = ssub.s32 128, 128
          %329 = vsyncadd %s320, %s328
          %s330 = smul.addr %s23, 2
          %s331 = smul.addr %s330, 64
          %s332 = scalar_lea.hbm %s5, %s331
          %s334 = sshll.u32 %s323, 4
          %s335 = int_to_ptr.vmem [resolvable:$true] %s334
          %337 = dma.vmem_to_hbm [thread:$0]  %s335, 128, %s332, %s320
        $region52: #{tpu_custom_call.1} parent=39 // pred_fallthru
          _
      $region40: #{tpu_custom_call.1} parent=5 // pred_fallthru
        _
      %p338 = scmp.le.s32.totalorder 2, %s18
      // Predicated region
      $region53: #{tpu_custom_call.1} parent=5 // pred_check
        %p339 = pneg %p338
      $region54: #{tpu_custom_call.1} parent=5 // pred_check_branch
        %341 = sbr.rel (%p339) target = $region56
      $region55: #{tpu_custom_call.1} parent=5 // pred_region
        %s342 = ssub.s32 %s18, 2
        // Predicated region
        $region57: #{tpu_custom_call.1} parent=55 // pred_check
          %p343 = pneg %p157
        $region58: #{tpu_custom_call.1} parent=55 // pred_check_branch
          %345 = sbr.rel (%p343) target = $region60
        $region59: #{tpu_custom_call.1} parent=55 // pred_region
          %s346 = sand.u32 %s142, 1
          %s347 = scalar_lea.sflag [#allocation4], %s346
          %s348 = sand.u32 %s142, 1
          %s349 = smul.addr %s348, 8
          %s350 = scalar_lea.vmem [#allocation7], %s349
          %351 = dma.done %s347, 128
        $region60: #{tpu_custom_call.1} parent=55 // pred_fallthru
          _
      $region56: #{tpu_custom_call.1} parent=5 // pred_fallthru
        _
    $region6: #{tpu_custom_call.1} parent=1 // loop_footer
      %s22 = sadd.s32 1, %s18
    $region7: #{tpu_custom_call.1} parent=1 // loop_footer_branch
      %17 = sbr.rel target = $region3
    $region8: #{tpu_custom_call.1} parent=1 // loop_exit
      _
    %352 = vsyncpa [#allocation3], 1
    %s353 = scalar_lea.sflag [#allocation3], 1
    %354 = vsyncpa %s353, 1
    %355 = vsyncpa [#allocation6], 1
    %356 = vsyncpa [#allocation4], 1
    %s357 = scalar_lea.sflag [#allocation4], 1
    %358 = vsyncpa %s357, 1

</llo_original>
